<compile_context>
chip_gen: v6e
topology: v6e:2x2x1
jax: 0.10.0
libtpu: 0.0.40
codegen_flags: <defaults>
</compile_context>

<pallas_src>
import functools

import jax
import jax.numpy as jnp
from jax.experimental import pallas as pl
from jax.experimental.pallas import tpu as pltpu

_EPS = 1e-5
_NPARAM = 11  # bias1, gamma1, beta1, bias2, alpha, bias3, bias4, gamma2, beta2, bias5, bias6


def _lane_group_allsum(v, group, width):
    """v: (1, group*width) f32.  Return, in every lane j, the sum over all lanes
    with the same channel residue j % group (per-channel sums, lane-dense)."""
    if width == 1:
        return v
    if width & (width - 1) == 0:               # power-of-two width: log-doubling
        shift = group
        while shift < group * width:
            v = v + pltpu.roll(v, shift, 1)
            shift *= 2
        return v
    acc = v                                    # general fallback
    for k in range(1, width):
        acc = acc + pltpu.roll(v, k * group, 1)
    return acc


def _normal_block_kernel(x_ref, w_ref, p_ref, o_ref, *, H, C):
    # x_ref : (ROWS=B*H, WC=W*C) f32  lane-dense input (NHWC, (W,C) on lanes)
    # w_ref : (4*WC, WC)         bf16 packed weights:
    #           rows [0, 3*WC)   = K-concatenated width-banded 3x3 conv1 weights
    #           rows [3*WC, 4*WC)= block-diagonal 1x1 conv2 weights
    # p_ref : (11, WC)           f32 per-channel params tiled across W groups
    # o_ref : (ROWS, WC)         f32 output
    ROWS, WC = x_ref.shape
    W = WC // C
    inv_n = 1.0 / float(ROWS * W)              # 1 / (N*H*W) for BN batch stats

    # Per-channel params hoisted once as (1, WC) slices (no re-broadcast later).
    p = p_ref[...]
    b1, g1, be1 = p[0:1, :], p[1:2, :], p[2:3, :]
    b2, alpha, b3 = p[3:4, :], p[4:5, :], p[5:6, :]
    b4, g2, be2 = p[6:7, :], p[7:8, :], p[8:9, :]
    b5, b6 = p[9:10, :], p[10:11, :]

    x = x_ref[...]                             # (ROWS, WC) f32
    xb_f = x + b1                              # bias1 folded (pad-after-bias)
    xb = xb_f.astype(jnp.bfloat16)

    # 3x3 conv height taps: +-1 row shift on the XLU + per-batch halo zero mask
    # (replaces the padded VMEM scratch entirely).
    h_idx = jax.lax.broadcasted_iota(jnp.int32, (ROWS, WC), 0) % H
    up_f = jnp.where(h_idx != 0, pltpu.roll(xb_f, 1, 0), 0.0)            # row h-1
    dn_f = jnp.where(h_idx != H - 1, pltpu.roll(xb_f, ROWS - 1, 0), 0.0)  # row h+1

    # --- conv1 (3x3, pad=1): ONE K-concatenated bf16 matmul, K = 3*WC.
    lhs = jnp.concatenate(
        [up_f.astype(jnp.bfloat16), xb, dn_f.astype(jnp.bfloat16)], axis=1)
    conv1 = jnp.dot(lhs, w_ref[0:3 * WC, :],
                    preferred_element_type=jnp.float32)

    # --- bn1 (training-mode batch stats): one-pass sum / sum-of-squares in f32,
    # per-channel fold across W lane groups via log2(W) XLU rolls.
    s = _lane_group_allsum(jnp.sum(conv1, axis=0, keepdims=True), C, W)
    ss = _lane_group_allsum(jnp.sum(conv1 * conv1, axis=0, keepdims=True), C, W)
    m = s * inv_n
    v = jnp.maximum(ss * inv_n - m * m, 0.0)   # guard one-pass cancellation
    scale1 = jax.lax.rsqrt(v + _EPS) * g1
    bn1 = (conv1 - m) * scale1 + be1

    # residual + bias2 + prelu1 + bias3
    out1 = x + bn1
    y = out1 + b2
    out1 = jnp.where(y >= 0, y, alpha * y) + b3

    # --- conv2 (1x1): single block-diagonal bf16 matmul.
    conv2 = jnp.dot((out1 + b4).astype(jnp.bfloat16), w_ref[3 * WC:4 * WC, :],
                    preferred_element_type=jnp.float32)

    # --- bn2
    s2 = _lane_group_allsum(jnp.sum(conv2, axis=0, keepdims=True), C, W)
    ss2 = _lane_group_allsum(jnp.sum(conv2 * conv2, axis=0, keepdims=True), C, W)
    m2 = s2 * inv_n
    v2 = jnp.maximum(ss2 * inv_n - m2 * m2, 0.0)
    scale2 = jax.lax.rsqrt(v2 + _EPS) * g2
    bn2 = (conv2 - m2) * scale2 + be2

    # residual + bias5 + prelu1 (shared alpha, as in the PyTorch forward) + bias6
    out2 = out1 + bn2
    y2 = out2 + b5
    out2 = jnp.where(y2 >= 0, y2, alpha * y2) + b6

    o_ref[...] = out2.astype(o_ref.dtype)      # (ROWS, 128) lane-dense store


def _build_conv1_bands_kcat(w1_hwio, W):
    """w1_hwio: (3, 3, C, C) HWIO.  Returns (3*W*C, W*C): per height-tap
    width-banded weight matrices stacked along K.  band_dy[win*C+cin, wout*C+cout]
    = w1[dy, win-wout+1, cin, cout] for |win-wout| <= 1, else 0 (width padding
    folded into the band truncation)."""
    C = w1_hwio.shape[2]
    bands = []
    for dy in range(3):
        band = jnp.zeros((W, C, W, C), w1_hwio.dtype)
        for dx in range(3):
            shift = dx - 1                     # w_in = w_out + dx - 1
            lo, hi = max(0, -shift), min(W, W - shift)
            wout = jnp.arange(lo, hi)
            win = wout + shift
            band = band.at[win, :, wout, :].add(
                jnp.broadcast_to(w1_hwio[dy, dx], (hi - lo, C, C)))
        bands.append(band.reshape(W * C, W * C))
    return jnp.concatenate(bands, axis=0)      # (3*W*C, W*C)


def _build_conv2_blockdiag(w2, W):
    """w2: (Cin, Cout).  Returns (W*C, W*C) block-diagonal 1x1-conv matrix."""
    C, Co = w2.shape
    bd = jnp.zeros((W, C, W, Co), w2.dtype)
    idx = jnp.arange(W)
    bd = bd.at[idx, :, idx, :].add(jnp.broadcast_to(w2, (W, C, Co)))
    return bd.reshape(W * C, W * Co)


def normal_block(x_nhwc, w1_hwio, w2, params_c):
    """x_nhwc (B,H,W,C) f32; w1_hwio (3,3,C,C); w2 (Cin,Cout); params_c (11,C).
    Returns (B,H,W,C) f32."""
    B, H, W, C = x_nhwc.shape
    WC = W * C
    ROWS = B * H

    x2d = x_nhwc.reshape(ROWS, WC)                                    # free reshape
    w_all = jnp.concatenate(
        [_build_conv1_bands_kcat(w1_hwio, W), _build_conv2_blockdiag(w2, W)],
        axis=0).astype(jnp.bfloat16)                                  # (4*WC, WC)
    p_wc = jnp.tile(params_c, (1, W)).astype(jnp.float32)             # (11, WC)

    flops = 2 * ROWS * (3 * WC) * WC + 2 * ROWS * WC * WC
    bytes_accessed = (2 * ROWS * WC + _NPARAM * WC) * 4 + 4 * WC * WC * 2

    grid_spec = pltpu.PrefetchScalarGridSpec(
        num_scalar_prefetch=0,
        grid=(1,),
        in_specs=[
            pl.BlockSpec((ROWS, WC), lambda i: (0, 0)),
            pl.BlockSpec((4 * WC, WC), lambda i: (0, 0)),
            pl.BlockSpec((_NPARAM, WC), lambda i: (0, 0)),
        ],
        out_specs=pl.BlockSpec((ROWS, WC), lambda i: (0, 0)),
    )
    out = pl.pallas_call(
        functools.partial(_normal_block_kernel, H=H, C=C),
        out_shape=jax.ShapeDtypeStruct((ROWS, WC), jnp.float32),
        grid_spec=grid_spec,
        compiler_params=pltpu.CompilerParams(
            dimension_semantics=("arbitrary",)),
        cost_estimate=pl.CostEstimate(
            flops=flops, transcendentals=2 * WC, bytes_accessed=bytes_accessed),
    )(x2d, w_all, p_wc)
    return out.reshape(B, H, W, C)


def reference(x_nhwc, w1_hwio, w2, params):
    """Pure-JAX f32 reference of the same forward (for verification)."""
    b1, g1, be1 = params[0], params[1], params[2]
    b2, alpha, b3 = params[3], params[4], params[5]
    b4, g2, be2 = params[6], params[7], params[8]
    b5, b6 = params[9], params[10]

    def bn(y, g, be):
        m = jnp.mean(y, axis=(0, 1, 2), keepdims=True)
        v = jnp.mean((y - m) ** 2, axis=(0, 1, 2), keepdims=True)
        return (y - m) * jax.lax.rsqrt(v + _EPS) * g + be

    conv1 = jax.lax.conv_general_dilated(
        x_nhwc + b1, w1_hwio, window_strides=(1, 1), padding=((1, 1), (1, 1)),
        dimension_numbers=("NHWC", "HWIO", "NHWC"),
        precision=jax.lax.Precision.HIGHEST)
    out1 = x_nhwc + bn(conv1, g1, be1)
    y = out1 + b2
    y = jnp.where(y >= 0, y, alpha * y)
    out1 = y + b3

    conv2 = jnp.einsum("bhwc,cd->bhwd", out1 + b4, w2,
                       precision=jax.lax.Precision.HIGHEST)
    out2 = out1 + bn(conv2, g2, be2)
    y2 = out2 + b5
    y2 = jnp.where(y2 >= 0, y2, alpha * y2)
    return y2 + b6


if __name__ == "__main__":
    B, C, H, W = 2, 8, 16, 16          # W*C = 128 -> fully lane-dense layout
    keys = jax.random.split(jax.random.PRNGKey(0), 8)

    # PyTorch-style NCHW input (layout mapping: NCHW -> NHWC around the kernel).
    x_nchw = jax.random.normal(keys[0], (B, C, H, W), jnp.float32)
    x_nhwc = jnp.transpose(x_nchw, (0, 2, 3, 1))

    # Deterministic synthetic parameters (shapes from NormalBlock.__init__).
    w1 = jax.random.normal(keys[1], (3, 3, C, C), jnp.float32) / (3.0 * jnp.sqrt(C))
    w2 = jax.random.normal(keys[2], (C, C), jnp.float32) / jnp.sqrt(C)
    biases = 0.1 * jax.random.normal(keys[3], (6, C), jnp.float32)       # bias1..bias6
    gammas = 1.0 + 0.1 * jax.random.normal(keys[4], (2, C), jnp.float32)
    betas = 0.1 * jax.random.normal(keys[5], (2, C), jnp.float32)
    alpha = 0.25 + 0.05 * jax.random.normal(keys[6], (C,), jnp.float32)  # shared prelu1

    params = jnp.stack([
        biases[0], gammas[0], betas[0],       # bias1, bn1.gamma, bn1.beta
        biases[1], alpha, biases[2],          # bias2, prelu1.alpha, bias3
        biases[3], gammas[1], betas[1],       # bias4, bn2.gamma, bn2.beta
        biases[4], biases[5],                 # bias5, bias6
    ], axis=0).astype(jnp.float32)            # (11, C)

    out_nhwc = normal_block(x_nhwc, w1, w2, params)
    jax.block_until_ready(out_nhwc)

    ref_nhwc = reference(x_nhwc, w1, w2, params)
    max_err = float(jnp.max(jnp.abs(out_nhwc - ref_nhwc)))
    # Error budget comes from bf16 MXU inputs (f32 accumulation) vs the f32
    # Precision.HIGHEST reference; do not tighten this without changing dtypes.
    assert max_err < 1e-1, f"kernel/reference mismatch: max abs err = {max_err}"

    out_nchw = jnp.transpose(out_nhwc, (0, 3, 1, 2))  # back to PyTorch layout
    jax.block_until_ready(out_nchw)
    print("KERNEL_OK")
</pallas_src>

<mosaic_0001>
module attributes {stable_mosaic.version = 11 : i64} {
  func.func @_normal_block_kernel(%arg0: i32, %arg1: memref<32x128xf32, #tpu.memory_space<vmem>>, %arg2: memref<512x128xbf16, #tpu.memory_space<vmem>>, %arg3: memref<11x128xf32, #tpu.memory_space<vmem>>, %arg4: memref<32x128xf32, #tpu.memory_space<vmem>>) attributes {dimension_semantics = [#tpu.dimension_semantics<arbitrary>], iteration_bounds = array<i64: 1>, scalar_prefetch = 0 : i64, scratch_operands = 0 : i64, tpu.core_type = #tpu.core_type<tc>, window_params = [{pipeline_mode = #tpu.pipeline_mode<synchronous>, transform_indices = @transform_0, window_bounds = array<i64: 32, 128>}, {pipeline_mode = #tpu.pipeline_mode<synchronous>, transform_indices = @transform_1, window_bounds = array<i64: 512, 128>}, {pipeline_mode = #tpu.pipeline_mode<synchronous>, transform_indices = @transform_2, window_bounds = array<i64: 11, 128>}, {pipeline_mode = #tpu.pipeline_mode<synchronous>, transform_indices = @transform_3, window_bounds = array<i64: 32, 128>}]} {
    %c0 = arith.constant 0 : index
    %c0_0 = arith.constant 0 : index
    %0 = vector.load %arg3[%c0, %c0_0] : memref<11x128xf32, #tpu.memory_space<vmem>>, vector<11x128xf32>
    %1 = vector.extract_strided_slice %0 {offsets = [0, 0], sizes = [1, 128], strides = [1, 1]} : vector<11x128xf32> to vector<1x128xf32>
    %2 = vector.extract_strided_slice %0 {offsets = [1, 0], sizes = [1, 128], strides = [1, 1]} : vector<11x128xf32> to vector<1x128xf32>
    %3 = vector.extract_strided_slice %0 {offsets = [2, 0], sizes = [1, 128], strides = [1, 1]} : vector<11x128xf32> to vector<1x128xf32>
    %4 = vector.extract_strided_slice %0 {offsets = [3, 0], sizes = [1, 128], strides = [1, 1]} : vector<11x128xf32> to vector<1x128xf32>
    %5 = vector.extract_strided_slice %0 {offsets = [4, 0], sizes = [1, 128], strides = [1, 1]} : vector<11x128xf32> to vector<1x128xf32>
    %6 = vector.extract_strided_slice %0 {offsets = [5, 0], sizes = [1, 128], strides = [1, 1]} : vector<11x128xf32> to vector<1x128xf32>
    %7 = vector.extract_strided_slice %0 {offsets = [6, 0], sizes = [1, 128], strides = [1, 1]} : vector<11x128xf32> to vector<1x128xf32>
    %8 = vector.extract_strided_slice %0 {offsets = [7, 0], sizes = [1, 128], strides = [1, 1]} : vector<11x128xf32> to vector<1x128xf32>
    %9 = vector.extract_strided_slice %0 {offsets = [8, 0], sizes = [1, 128], strides = [1, 1]} : vector<11x128xf32> to vector<1x128xf32>
    %10 = vector.extract_strided_slice %0 {offsets = [9, 0], sizes = [1, 128], strides = [1, 1]} : vector<11x128xf32> to vector<1x128xf32>
    %11 = vector.extract_strided_slice %0 {offsets = [10, 0], sizes = [1, 128], strides = [1, 1]} : vector<11x128xf32> to vector<1x128xf32>
    %c0_1 = arith.constant 0 : index
    %c0_2 = arith.constant 0 : index
    %12 = vector.load %arg1[%c0_1, %c0_2] : memref<32x128xf32, #tpu.memory_space<vmem>>, vector<32x128xf32>
    %13 = vector.broadcast %1 : vector<1x128xf32> to vector<32x128xf32>
    %14 = arith.addf %12, %13 : vector<32x128xf32>
    %15 = arith.truncf %14 : vector<32x128xf32> to vector<32x128xbf16>
    %16 = tpu.iota {dimensions = array<i32: 0>} : vector<32x128xi32>
    %c16_i32 = arith.constant 16 : i32
    %c0_i32 = arith.constant 0 : i32
    %17 = arith.cmpi eq, %c16_i32, %c0_i32 : i32
    %c1_i32 = arith.constant 1 : i32
    %18 = arith.select %17, %c1_i32, %c16_i32 : i32
    %19 = vector.broadcast %18 : i32 to vector<32x128xi32>
    %20 = arith.remsi %16, %19 : vector<32x128xi32>
    %c0_i32_3 = arith.constant 0 : i32
    %21 = vector.broadcast %c0_i32_3 : i32 to vector<32x128xi32>
    %22 = arith.cmpi ne, %20, %21 : vector<32x128xi32>
    %c0_i32_4 = arith.constant 0 : i32
    %23 = vector.broadcast %c0_i32_4 : i32 to vector<32x128xi32>
    %24 = arith.cmpi slt, %20, %23 : vector<32x128xi32>
    %c0_i32_5 = arith.constant 0 : i32
    %25 = arith.cmpi slt, %18, %c0_i32_5 : i32
    %26 = vector.broadcast %25 : i1 to vector<32x128xi1>
    %27 = vector.broadcast %26 : vector<32x128xi1> to vector<32x128xi1>
    %28 = arith.xori %24, %27 : vector<32x128xi1>
    %29 = arith.andi %28, %22 : vector<32x128xi1>
    %30 = vector.broadcast %18 : i32 to vector<32x128xi32>
    %31 = arith.addi %20, %30 : vector<32x128xi32>
    %32 = arith.select %29, %31, %20 : vector<32x128xi1>, vector<32x128xi32>
    %c0_i32_6 = arith.constant 0 : i32
    %33 = vector.broadcast %c0_i32_6 : i32 to vector<32x128xi32>
    %34 = arith.cmpi ne, %32, %33 : vector<32x128xi32>
    %c1_i32_7 = arith.constant 1 : i32
    %35 = tpu.dynamic_rotate %14 by %c1_i32_7 dim 0 : vector<32x128xf32>, i32 -> vector<32x128xf32>
    %cst = arith.constant 0.000000e+00 : f32
    %36 = vector.broadcast %cst : f32 to vector<32x128xf32>
    %37 = arith.select %34, %35, %36 : vector<32x128xi1>, vector<32x128xf32>
    %c15_i32 = arith.constant 15 : i32
    %38 = vector.broadcast %c15_i32 : i32 to vector<32x128xi32>
    %39 = arith.cmpi ne, %32, %38 : vector<32x128xi32>
    %c31_i32 = arith.constant 31 : i32
    %40 = tpu.dynamic_rotate %14 by %c31_i32 dim 0 : vector<32x128xf32>, i32 -> vector<32x128xf32>
    %cst_8 = arith.constant 0.000000e+00 : f32
    %41 = vector.broadcast %cst_8 : f32 to vector<32x128xf32>
    %42 = arith.select %39, %40, %41 : vector<32x128xi1>, vector<32x128xf32>
    %43 = arith.truncf %37 : vector<32x128xf32> to vector<32x128xbf16>
    %44 = arith.truncf %42 : vector<32x128xf32> to vector<32x128xbf16>
    %45 = tpu.concatenate %43, %15, %44 in 1 : vector<32x128xbf16>, vector<32x128xbf16>, vector<32x128xbf16> -> vector<32x384xbf16>
    %c0_9 = arith.constant 0 : index
    %c0_10 = arith.constant 0 : index
    %46 = vector.load %arg2[%c0_9, %c0_10] : memref<512x128xbf16, #tpu.memory_space<vmem>>, vector<384x128xbf16>
    %cst_11 = arith.constant dense<0.000000e+00> : vector<32x128xf32>
    %47 = tpu.matmul %45, %46, %cst_11 {dimension_numbers = #tpu.dot_dimension_numbers<[1], [0], [0], [1], [0, 0, 1, 1], [], []>} : vector<32x384xbf16>, vector<384x128xbf16>, vector<32x128xf32> -> vector<32x128xf32>
    %cst_12 = arith.constant dense<0.000000e+00> : vector<128xf32>
    %48 = vector.multi_reduction <add>, %47, %cst_12 [0] : vector<32x128xf32> to vector<128xf32>
    %49 = vector.shape_cast %48 : vector<128xf32> to vector<1x128xf32>
    %c8_i32 = arith.constant 8 : i32
    %50 = tpu.dynamic_rotate %49 by %c8_i32 dim 1 : vector<1x128xf32>, i32 -> vector<1x128xf32>
    %51 = arith.addf %49, %50 : vector<1x128xf32>
    %c16_i32_13 = arith.constant 16 : i32
    %52 = tpu.dynamic_rotate %51 by %c16_i32_13 dim 1 : vector<1x128xf32>, i32 -> vector<1x128xf32>
    %53 = arith.addf %51, %52 : vector<1x128xf32>
    %c32_i32 = arith.constant 32 : i32
    %54 = tpu.dynamic_rotate %53 by %c32_i32 dim 1 : vector<1x128xf32>, i32 -> vector<1x128xf32>
    %55 = arith.addf %53, %54 : vector<1x128xf32>
    %c64_i32 = arith.constant 64 : i32
    %56 = tpu.dynamic_rotate %55 by %c64_i32 dim 1 : vector<1x128xf32>, i32 -> vector<1x128xf32>
    %57 = arith.addf %55, %56 : vector<1x128xf32>
    %58 = arith.mulf %47, %47 : vector<32x128xf32>
    %cst_14 = arith.constant dense<0.000000e+00> : vector<128xf32>
    %59 = vector.multi_reduction <add>, %58, %cst_14 [0] : vector<32x128xf32> to vector<128xf32>
    %60 = vector.shape_cast %59 : vector<128xf32> to vector<1x128xf32>
    %c8_i32_15 = arith.constant 8 : i32
    %61 = tpu.dynamic_rotate %60 by %c8_i32_15 dim 1 : vector<1x128xf32>, i32 -> vector<1x128xf32>
    %62 = arith.addf %60, %61 : vector<1x128xf32>
    %c16_i32_16 = arith.constant 16 : i32
    %63 = tpu.dynamic_rotate %62 by %c16_i32_16 dim 1 : vector<1x128xf32>, i32 -> vector<1x128xf32>
    %64 = arith.addf %62, %63 : vector<1x128xf32>
    %c32_i32_17 = arith.constant 32 : i32
    %65 = tpu.dynamic_rotate %64 by %c32_i32_17 dim 1 : vector<1x128xf32>, i32 -> vector<1x128xf32>
    %66 = arith.addf %64, %65 : vector<1x128xf32>
    %c64_i32_18 = arith.constant 64 : i32
    %67 = tpu.dynamic_rotate %66 by %c64_i32_18 dim 1 : vector<1x128xf32>, i32 -> vector<1x128xf32>
    %68 = arith.addf %66, %67 : vector<1x128xf32>
    %cst_19 = arith.constant 0.001953125 : f32
    %69 = vector.broadcast %cst_19 : f32 to vector<1x128xf32>
    %70 = arith.mulf %57, %69 : vector<1x128xf32>
    %cst_20 = arith.constant 0.001953125 : f32
    %71 = vector.broadcast %cst_20 : f32 to vector<1x128xf32>
    %72 = arith.mulf %68, %71 : vector<1x128xf32>
    %73 = arith.mulf %70, %70 : vector<1x128xf32>
    %74 = arith.subf %72, %73 : vector<1x128xf32>
    %cst_21 = arith.constant 0.000000e+00 : f32
    %75 = vector.broadcast %cst_21 : f32 to vector<1x128xf32>
    %76 = arith.maximumf %74, %75 : vector<1x128xf32>
    %cst_22 = arith.constant 9.99999974E-6 : f32
    %77 = vector.broadcast %cst_22 : f32 to vector<1x128xf32>
    %78 = arith.addf %76, %77 : vector<1x128xf32>
    %79 = math.rsqrt %78 : vector<1x128xf32>
    %80 = arith.mulf %79, %2 : vector<1x128xf32>
    %81 = vector.broadcast %70 : vector<1x128xf32> to vector<32x128xf32>
    %82 = arith.subf %47, %81 : vector<32x128xf32>
    %83 = vector.broadcast %80 : vector<1x128xf32> to vector<32x128xf32>
    %84 = arith.mulf %82, %83 : vector<32x128xf32>
    %85 = vector.broadcast %3 : vector<1x128xf32> to vector<32x128xf32>
    %86 = arith.addf %84, %85 : vector<32x128xf32>
    %87 = arith.addf %12, %86 : vector<32x128xf32>
    %88 = vector.broadcast %4 : vector<1x128xf32> to vector<32x128xf32>
    %89 = arith.addf %87, %88 : vector<32x128xf32>
    %cst_23 = arith.constant 0.000000e+00 : f32
    %90 = vector.broadcast %cst_23 : f32 to vector<32x128xf32>
    %91 = arith.cmpf oge, %89, %90 : vector<32x128xf32>
    %92 = vector.broadcast %5 : vector<1x128xf32> to vector<32x128xf32>
    %93 = arith.mulf %92, %89 : vector<32x128xf32>
    %94 = arith.select %91, %89, %93 : vector<32x128xi1>, vector<32x128xf32>
    %95 = vector.broadcast %6 : vector<1x128xf32> to vector<32x128xf32>
    %96 = arith.addf %94, %95 : vector<32x128xf32>
    %97 = vector.broadcast %7 : vector<1x128xf32> to vector<32x128xf32>
    %98 = arith.addf %96, %97 : vector<32x128xf32>
    %99 = arith.truncf %98 : vector<32x128xf32> to vector<32x128xbf16>
    %c384 = arith.constant 384 : index
    %c0_24 = arith.constant 0 : index
    %100 = vector.load %arg2[%c384, %c0_24] : memref<512x128xbf16, #tpu.memory_space<vmem>>, vector<128x128xbf16>
    %cst_25 = arith.constant dense<0.000000e+00> : vector<32x128xf32>
    %101 = tpu.matmul %99, %100, %cst_25 {dimension_numbers = #tpu.dot_dimension_numbers<[1], [0], [0], [1], [0, 0, 1, 1], [], []>} : vector<32x128xbf16>, vector<128x128xbf16>, vector<32x128xf32> -> vector<32x128xf32>
    %cst_26 = arith.constant dense<0.000000e+00> : vector<128xf32>
    %102 = vector.multi_reduction <add>, %101, %cst_26 [0] : vector<32x128xf32> to vector<128xf32>
    %103 = vector.shape_cast %102 : vector<128xf32> to vector<1x128xf32>
    %c8_i32_27 = arith.constant 8 : i32
    %104 = tpu.dynamic_rotate %103 by %c8_i32_27 dim 1 : vector<1x128xf32>, i32 -> vector<1x128xf32>
    %105 = arith.addf %103, %104 : vector<1x128xf32>
    %c16_i32_28 = arith.constant 16 : i32
    %106 = tpu.dynamic_rotate %105 by %c16_i32_28 dim 1 : vector<1x128xf32>, i32 -> vector<1x128xf32>
    %107 = arith.addf %105, %106 : vector<1x128xf32>
    %c32_i32_29 = arith.constant 32 : i32
    %108 = tpu.dynamic_rotate %107 by %c32_i32_29 dim 1 : vector<1x128xf32>, i32 -> vector<1x128xf32>
    %109 = arith.addf %107, %108 : vector<1x128xf32>
    %c64_i32_30 = arith.constant 64 : i32
    %110 = tpu.dynamic_rotate %109 by %c64_i32_30 dim 1 : vector<1x128xf32>, i32 -> vector<1x128xf32>
    %111 = arith.addf %109, %110 : vector<1x128xf32>
    %112 = arith.mulf %101, %101 : vector<32x128xf32>
    %cst_31 = arith.constant dense<0.000000e+00> : vector<128xf32>
    %113 = vector.multi_reduction <add>, %112, %cst_31 [0] : vector<32x128xf32> to vector<128xf32>
    %114 = vector.shape_cast %113 : vector<128xf32> to vector<1x128xf32>
    %c8_i32_32 = arith.constant 8 : i32
    %115 = tpu.dynamic_rotate %114 by %c8_i32_32 dim 1 : vector<1x128xf32>, i32 -> vector<1x128xf32>
    %116 = arith.addf %114, %115 : vector<1x128xf32>
    %c16_i32_33 = arith.constant 16 : i32
    %117 = tpu.dynamic_rotate %116 by %c16_i32_33 dim 1 : vector<1x128xf32>, i32 -> vector<1x128xf32>
    %118 = arith.addf %116, %117 : vector<1x128xf32>
    %c32_i32_34 = arith.constant 32 : i32
    %119 = tpu.dynamic_rotate %118 by %c32_i32_34 dim 1 : vector<1x128xf32>, i32 -> vector<1x128xf32>
    %120 = arith.addf %118, %119 : vector<1x128xf32>
    %c64_i32_35 = arith.constant 64 : i32
    %121 = tpu.dynamic_rotate %120 by %c64_i32_35 dim 1 : vector<1x128xf32>, i32 -> vector<1x128xf32>
    %122 = arith.addf %120, %121 : vector<1x128xf32>
    %cst_36 = arith.constant 0.001953125 : f32
    %123 = vector.broadcast %cst_36 : f32 to vector<1x128xf32>
    %124 = arith.mulf %111, %123 : vector<1x128xf32>
    %cst_37 = arith.constant 0.001953125 : f32
    %125 = vector.broadcast %cst_37 : f32 to vector<1x128xf32>
    %126 = arith.mulf %122, %125 : vector<1x128xf32>
    %127 = arith.mulf %124, %124 : vector<1x128xf32>
    %128 = arith.subf %126, %127 : vector<1x128xf32>
    %cst_38 = arith.constant 0.000000e+00 : f32
    %129 = vector.broadcast %cst_38 : f32 to vector<1x128xf32>
    %130 = arith.maximumf %128, %129 : vector<1x128xf32>
    %cst_39 = arith.constant 9.99999974E-6 : f32
    %131 = vector.broadcast %cst_39 : f32 to vector<1x128xf32>
    %132 = arith.addf %130, %131 : vector<1x128xf32>
    %133 = math.rsqrt %132 : vector<1x128xf32>
    %134 = arith.mulf %133, %8 : vector<1x128xf32>
    %135 = vector.broadcast %124 : vector<1x128xf32> to vector<32x128xf32>
    %136 = arith.subf %101, %135 : vector<32x128xf32>
    %137 = vector.broadcast %134 : vector<1x128xf32> to vector<32x128xf32>
    %138 = arith.mulf %136, %137 : vector<32x128xf32>
    %139 = vector.broadcast %9 : vector<1x128xf32> to vector<32x128xf32>
    %140 = arith.addf %138, %139 : vector<32x128xf32>
    %141 = arith.addf %96, %140 : vector<32x128xf32>
    %142 = vector.broadcast %10 : vector<1x128xf32> to vector<32x128xf32>
    %143 = arith.addf %141, %142 : vector<32x128xf32>
    %cst_40 = arith.constant 0.000000e+00 : f32
    %144 = vector.broadcast %cst_40 : f32 to vector<32x128xf32>
    %145 = arith.cmpf oge, %143, %144 : vector<32x128xf32>
    %146 = vector.broadcast %5 : vector<1x128xf32> to vector<32x128xf32>
    %147 = arith.mulf %146, %143 : vector<32x128xf32>
    %148 = arith.select %145, %143, %147 : vector<32x128xi1>, vector<32x128xf32>
    %149 = vector.broadcast %11 : vector<1x128xf32> to vector<32x128xf32>
    %150 = arith.addf %148, %149 : vector<32x128xf32>
    %c0_41 = arith.constant 0 : index
    %c0_42 = arith.constant 0 : index
    %151 = vector.load %arg4[%c0_41, %c0_42] : memref<32x128xf32, #tpu.memory_space<vmem>>, vector<32x128xf32>
    tpu.vector_store %arg4[%c0_41, %c0_42], %150 {strides = array<i32>} : memref<32x128xf32, #tpu.memory_space<vmem>>, vector<32x128xf32>,
    return
  }
  func.func @transform_0(%arg0: i32) -> (i32, i32) {
    %c0_i32 = arith.constant 0 : i32
    %c0_i32_0 = arith.constant 0 : i32
    %c0_i32_1 = arith.constant 0 : i32
    return %c0_i32, %c0_i32_0 : i32, i32
  }
  func.func @transform_1(%arg0: i32) -> (i32, i32) {
    %c0_i32 = arith.constant 0 : i32
    %c0_i32_0 = arith.constant 0 : i32
    %c0_i32_1 = arith.constant 0 : i32
    return %c0_i32, %c0_i32_0 : i32, i32
  }
  func.func @transform_2(%arg0: i32) -> (i32, i32) {
    %c0_i32 = arith.constant 0 : i32
    %c0_i32_0 = arith.constant 0 : i32
    %c0_i32_1 = arith.constant 0 : i32
    return %c0_i32, %c0_i32_0 : i32, i32
  }
  func.func @transform_3(%arg0: i32) -> (i32, i32) {
    %c0_i32 = arith.constant 0 : i32
    %c0_i32_0 = arith.constant 0 : i32
    %c0_i32_1 = arith.constant 0 : i32
    return %c0_i32, %c0_i32_0 : i32, i32
  }
}

</mosaic_0001>

<llo_original>
// kernel: tpu_custom_call.1
$region0: #{tpu_custom_call.1}
  #allocation0 [shape = 'u32[]', space=smem, size = 0x4, offset = 0x4, fixed_abs, tag = 'smem constant byte address 0x4 - core index']
  #allocation1 [shape = 'u32[144,128]{1,0:T(1,128)}', space=vmem, size = 0x12000, scoped, tag = 'internal scratch']
  %s0 = inlined_call_operand.hbm [shape: f32[32,128], index: 0, kind: input, shape index: {}]
  %s1 = inlined_call_operand.hbm [shape: bf16[512,128], index: 1, kind: input, shape index: {}]
  %s2 = inlined_call_operand.hbm [shape: f32[11,128], index: 2, kind: input, shape index: {}]
  %s3 = inlined_call_operand.hbm [shape: f32[32,128], index: 3, kind: output, shape index: {}]
  %s4 = sld [smem:[#allocation0]]
  $region34: #{tpu_custom_call.1} parent=0
    _
  %s6 = ssub.s32 1, %s4
  %s7 = scalar_select 0, %s6, %s4
  $region1: #{tpu_custom_call.1} parent=0
    #allocation2 [shape = 'u8[16384]{0}', space=vmem, size = 0x4000, scoped, tag = 'input window, operand 0, single buffered']
    #allocation3 [shape = 's32[1]{0}', space=sflag, size = 0x4, scoped, tag = 'scoped memory for tpu_custom_call.1']
    #allocation4 [shape = 's32[1]{0}', space=sflag, size = 0x4, scoped, tag = 'scoped memory for tpu_custom_call.1']
    #allocation5 [shape = 'u8[131072]{0}', space=vmem, size = 0x20000, scoped, tag = 'input window, operand 1, single buffered']
    #allocation6 [shape = 's32[1]{0}', space=sflag, size = 0x4, scoped, tag = 'scoped memory for tpu_custom_call.1']
    #allocation7 [shape = 'u8[8192]{0}', space=vmem, size = 0x2000, scoped, tag = 'input window, operand 2, single buffered']
    #allocation8 [shape = 'u8[16384]{0}', space=vmem, size = 0x4000, scoped, tag = 'output window, operand 0, single buffered']
    %8 = vsyncpa [#allocation3], 0
    %9 = vsyncpa [#allocation6], 0
    %10 = vsyncpa [#allocation4], 0
    // Predicated region
    $region2: #{tpu_custom_call.1} parent=1 // pred_check
      _
    $region3: #{tpu_custom_call.1} parent=1 // pred_check_branch
      %12 = sbr.rel (0) target = $region5
    $region4: #{tpu_custom_call.1} parent=1 // pred_region
      %s14 = ssub.s32 512, 512
      %15 = vsyncadd [#allocation3], %s14
      %s16 = sshll.u32 [#allocation2], 4
      %s17 = int_to_ptr.vmem [resolvable:$true] %s16
      %22 = dma.hbm_to_vmem [thread:$0]  %s0, 512, %s17, [#allocation3], 128, 128, 8
    $region5: #{tpu_custom_call.1} parent=1 // pred_fallthru
      _
    // Predicated region
    $region6: #{tpu_custom_call.1} parent=1 // pred_check
      _
    $region7: #{tpu_custom_call.1} parent=1 // pred_check_branch
      %24 = sbr.rel (0) target = $region9
    $region8: #{tpu_custom_call.1} parent=1 // pred_region
      %s26 = ssub.s32 4096, 4096
      %27 = vsyncadd [#allocation6], %s26
      %s28 = sshll.u32 [#allocation5], 4
      %s29 = int_to_ptr.vmem [resolvable:$true] %s28
      %34 = dma.hbm_to_vmem [thread:$0]  %s1, 4096, %s29, [#allocation6], 64, 64, 4
    $region9: #{tpu_custom_call.1} parent=1 // pred_fallthru
      _
    // Predicated region
    $region10: #{tpu_custom_call.1} parent=1 // pred_check
      _
    $region11: #{tpu_custom_call.1} parent=1 // pred_check_branch
      %36 = sbr.rel (0) target = $region13
    $region12: #{tpu_custom_call.1} parent=1 // pred_region
      %s38 = ssub.s32 256, 256
      %39 = vsyncadd [#allocation6], %s38
      %s40 = sshll.u32 [#allocation7], 4
      %s41 = int_to_ptr.vmem [resolvable:$true] %s40
      %46 = dma.hbm_to_vmem [thread:$0]  %s2, 256, %s41, [#allocation6], 128, 128, 8
    $region13: #{tpu_custom_call.1} parent=1 // pred_fallthru
      _
    // Predicated region
    $region14: #{tpu_custom_call.1} parent=1 // pred_check
      _
    $region15: #{tpu_custom_call.1} parent=1 // pred_check_branch
      %48 = sbr.rel (0) target = $region17
    $region16: #{tpu_custom_call.1} parent=1 // pred_region
      %49 = dma.done [#allocation3], 512
    $region17: #{tpu_custom_call.1} parent=1 // pred_fallthru
      _
    // Predicated region
    $region18: #{tpu_custom_call.1} parent=1 // pred_check
      _
    $region19: #{tpu_custom_call.1} parent=1 // pred_check_branch
      %51 = sbr.rel (0) target = $region21
    $region20: #{tpu_custom_call.1} parent=1 // pred_region
      %52 = dma.done [#allocation6], 4096
    $region21: #{tpu_custom_call.1} parent=1 // pred_fallthru
      _
    // Predicated region
    $region22: #{tpu_custom_call.1} parent=1 // pred_check
      _
    $region23: #{tpu_custom_call.1} parent=1 // pred_check_branch
      %54 = sbr.rel (0) target = $region25
    $region24: #{tpu_custom_call.1} parent=1 // pred_region
      %55 = dma.done [#allocation6], 256
    $region25: #{tpu_custom_call.1} parent=1 // pred_fallthru
      _
    %v57 = vld [vmem:[#allocation7] sm:$0xff]
    %v58 = vld [vmem:[#allocation7 + $0x8] sm:$0x7]
    %v59 = vld [vmem:[#allocation2] sm:$0xff]
    %v60 = vld [vmem:[#allocation2 + $0x8] sm:$0xff]
    %v61 = vld [vmem:[#allocation2 + $0x10] sm:$0xff]
    %v62 = vld [vmem:[#allocation2 + $0x18] sm:$0xff]
    %v63 = vlaneseq
    %v64 = vshrl.u32 %v63, 7
    %v65 = vsub.s32 0, %v64
    %v66 = vrot.slane %v57, %v65
    %v67 = vadd.f32 %v59, %v66
    %v68 = vadd.f32 %v60, %v66
    %v69 = vadd.f32 %v61, %v66
    %v70 = vadd.f32 %v62, %v66
    %v71 = vpack.c.bf16 %v68, %v67
    %v72 = vpack.c.bf16 %v70, %v69
    %v73 = vlaneseq
    %v74 = vshrl.u32 %v73, 7
    %v75 = vadd.s32 %v74, 8
    %v76 = vadd.s32 %v74, 16
    %v77 = vadd.s32 %v74, 24
    %vm78 = vcmp.lt.s32.totalorder %v74, 0
    %v79 = vsub.s32 0, %v74
    %v80 = vsel %vm78, %v79, %v74
    %v81 = vshrl.u32 %v80, 4
    %v82 = vand.u32 %v80, 15
    %v83 = vsub.s32 0, %v82
    %v84 = vsel %vm78, %v83, %v82
    %vm85 = vcmp.lt.s32.totalorder %v75, 0
    %v86 = vsub.s32 0, %v75
    %v87 = vsel %vm85, %v86, %v75
    %v88 = vshrl.u32 %v87, 4
    %v89 = vand.u32 %v87, 15
    %v90 = vsub.s32 0, %v89
    %v91 = vsel %vm85, %v90, %v89
    %vm92 = vcmp.lt.s32.totalorder %v76, 0
    %v93 = vsub.s32 0, %v76
    %v94 = vsel %vm92, %v93, %v76
    %v95 = vshrl.u32 %v94, 4
    %v96 = vand.u32 %v94, 15
    %v97 = vsub.s32 0, %v96
    %v98 = vsel %vm92, %v97, %v96
    %vm99 = vcmp.lt.s32.totalorder %v77, 0
    %v100 = vsub.s32 0, %v77
    %v101 = vsel %vm99, %v100, %v77
    %v102 = vshrl.u32 %v101, 4
    %v103 = vand.u32 %v101, 15
    %v104 = vsub.s32 0, %v103
    %v105 = vsel %vm99, %v104, %v103
    %vm106 = vcmp.ne.s32.totalorder %v84, 0
    %vm107 = vcmp.ne.s32.totalorder %v91, 0
    %vm108 = vcmp.ne.s32.totalorder %v98, 0
    %vm109 = vcmp.ne.s32.totalorder %v105, 0
    %vm110 = vcmp.lt.s32.totalorder %v84, 0
    %vm111 = vcmp.lt.s32.totalorder %v91, 0
    %vm112 = vcmp.lt.s32.totalorder %v98, 0
    %vm113 = vcmp.lt.s32.totalorder %v105, 0
    %vm114 = vmand %vm110, %vm106
    %vm115 = vmand %vm111, %vm107
    %vm116 = vmand %vm112, %vm108
    %vm117 = vmand %vm113, %vm109
    %v118 = vadd.s32 %v84, 16
    %v119 = vadd.s32 %v91, 16
    %v120 = vadd.s32 %v98, 16
    %v121 = vadd.s32 %v105, 16
    %v122 = vsel %vm114, %v118, %v84
    %v123 = vsel %vm115, %v119, %v91
    %v124 = vsel %vm116, %v120, %v98
    %v125 = vsel %vm117, %v121, %v105
    %vm126 = vcmp.ne.s32.totalorder %v122, 0
    %vm127 = vcmp.ne.s32.totalorder %v123, 0
    %vm128 = vcmp.ne.s32.totalorder %v124, 0
    %vm129 = vcmp.ne.s32.totalorder %v125, 0
    %v130 = vrot.slane %v67, 7
    %v131 = vrot.slane %v68, 7
    %v132 = vrot.slane %v69, 7
    %v133 = vrot.slane %v70, 7
    %vm134 = vcmp.lt.s32.totalorder %v74, 1
    %v135 = vsel %vm134, %v132, %v133
    %v136 = vsel %vm134, %v131, %v132
    %v137 = vsel %vm134, %v130, %v131
    %v138 = vsel %vm134, %v133, %v130
    %v139 = vsel %vm126, %v138, 0.0
    %v140 = vsel %vm127, %v137, 0.0
    %v141 = vsel %vm128, %v136, 0.0
    %v142 = vsel %vm129, %v135, 0.0
    %vm143 = vcmp.ne.s32.totalorder %v122, 15
    %vm144 = vcmp.ne.s32.totalorder %v123, 15
    %vm145 = vcmp.ne.s32.totalorder %v124, 15
    %vm146 = vcmp.ne.s32.totalorder %v125, 15
    %v147 = vrot.slane %v67, 1
    %v148 = vrot.slane %v68, 1
    %v149 = vrot.slane %v69, 1
    %v150 = vrot.slane %v70, 1
    %vm151 = vcmp.lt.s32.totalorder %v74, 7
    %v152 = vsel %vm151, %v149, %v150
    %v153 = vsel %vm151, %v148, %v149
    %v154 = vsel %vm151, %v147, %v148
    %v155 = vsel %vm151, %v150, %v147
    %v156 = vsel %vm143, %v154, 0.0
    %v157 = vsel %vm144, %v153, 0.0
    %v158 = vsel %vm145, %v152, 0.0
    %v159 = vsel %vm146, %v155, 0.0
    %v160 = vpack.c.bf16 %v140, %v139
    %v161 = vpack.c.bf16 %v142, %v141
    %v162 = vpack.c.bf16 %v157, %v156
    %v163 = vpack.c.bf16 %v159, %v158
    %v164 = vld [vmem:[#allocation5] sm:$0xf]
    %v165 = vld [vmem:[#allocation5 + $0x4] sm:$0xf]
    %v166 = vld [vmem:[#allocation5 + $0x8] sm:$0xf]
    %v167 = vld [vmem:[#allocation5 + $0xc] sm:$0xf]
    %v168 = vld [vmem:[#allocation5 + $0x10] sm:$0xf]
    %v169 = vld [vmem:[#allocation5 + $0x14] sm:$0xf]
    %v170 = vld [vmem:[#allocation5 + $0x18] sm:$0xf]
    %v171 = vld [vmem:[#allocation5 + $0x1c] sm:$0xf]
    %v172 = vld [vmem:[#allocation5 + $0x20] sm:$0xf]
    %v173 = vld [vmem:[#allocation5 + $0x24] sm:$0xf]
    %v174 = vld [vmem:[#allocation5 + $0x28] sm:$0xf]
    %v175 = vld [vmem:[#allocation5 + $0x2c] sm:$0xf]
    %v176 = vld [vmem:[#allocation5 + $0x30] sm:$0xf]
    %v177 = vld [vmem:[#allocation5 + $0x34] sm:$0xf]
    %v178 = vld [vmem:[#allocation5 + $0x38] sm:$0xf]
    %v179 = vld [vmem:[#allocation5 + $0x3c] sm:$0xf]
    %v180 = vld [vmem:[#allocation5 + $0x40] sm:$0xf]
    %v181 = vld [vmem:[#allocation5 + $0x44] sm:$0xf]
    %v182 = vld [vmem:[#allocation5 + $0x48] sm:$0xf]
    %v183 = vld [vmem:[#allocation5 + $0x4c] sm:$0xf]
    %v184 = vld [vmem:[#allocation5 + $0x50] sm:$0xf]
    %v185 = vld [vmem:[#allocation5 + $0x54] sm:$0xf]
    %v186 = vld [vmem:[#allocation5 + $0x58] sm:$0xf]
    %v187 = vld [vmem:[#allocation5 + $0x5c] sm:$0xf]
    %v188 = vld [vmem:[#allocation5 + $0x60] sm:$0xf]
    %v189 = vld [vmem:[#allocation5 + $0x64] sm:$0xf]
    %v190 = vld [vmem:[#allocation5 + $0x68] sm:$0xf]
    %v191 = vld [vmem:[#allocation5 + $0x6c] sm:$0xf]
    %v192 = vld [vmem:[#allocation5 + $0x70] sm:$0xf]
    %v193 = vld [vmem:[#allocation5 + $0x74] sm:$0xf]
    %v194 = vld [vmem:[#allocation5 + $0x78] sm:$0xf]
    %v195 = vld [vmem:[#allocation5 + $0x7c] sm:$0xf]
    %v196 = vld [vmem:[#allocation5 + $0x80] sm:$0xf]
    %v197 = vld [vmem:[#allocation5 + $0x84] sm:$0xf]
    %v198 = vld [vmem:[#allocation5 + $0x88] sm:$0xf]
    %v199 = vld [vmem:[#allocation5 + $0x8c] sm:$0xf]
    %v200 = vld [vmem:[#allocation5 + $0x90] sm:$0xf]
    %v201 = vld [vmem:[#allocation5 + $0x94] sm:$0xf]
    %v202 = vld [vmem:[#allocation5 + $0x98] sm:$0xf]
    %v203 = vld [vmem:[#allocation5 + $0x9c] sm:$0xf]
    %v204 = vld [vmem:[#allocation5 + $0xa0] sm:$0xf]
    %v205 = vld [vmem:[#allocation5 + $0xa4] sm:$0xf]
    %v206 = vld [vmem:[#allocation5 + $0xa8] sm:$0xf]
    %v207 = vld [vmem:[#allocation5 + $0xac] sm:$0xf]
    %v208 = vld [vmem:[#allocation5 + $0xb0] sm:$0xf]
    %v209 = vld [vmem:[#allocation5 + $0xb4] sm:$0xf]
    %v210 = vld [vmem:[#allocation5 + $0xb8] sm:$0xf]
    %v211 = vld [vmem:[#allocation5 + $0xbc] sm:$0xf]
    %v260 = vunpack.c.l.b16 %v164
    %v261 = vunpack.c.l.b16 %v165
    %v262 = vunpack.c.l.b16 %v166
    %v263 = vunpack.c.l.b16 %v167
    %v264 = vunpack.c.l.b16 %v168
    %v265 = vunpack.c.l.b16 %v169
    %v266 = vunpack.c.l.b16 %v170
    %v267 = vunpack.c.l.b16 %v171
    %v268 = vunpack.c.l.b16 %v172
    %v269 = vunpack.c.l.b16 %v173
    %v270 = vunpack.c.l.b16 %v174
    %v271 = vunpack.c.l.b16 %v175
    %v272 = vunpack.c.l.b16 %v176
    %v273 = vunpack.c.l.b16 %v177
    %v274 = vunpack.c.l.b16 %v178
    %v275 = vunpack.c.l.b16 %v179
    %v276 = vunpack.c.l.b16 %v180
    %v277 = vunpack.c.l.b16 %v181
    %v278 = vunpack.c.l.b16 %v182
    %v279 = vunpack.c.l.b16 %v183
    %v280 = vunpack.c.l.b16 %v184
    %v281 = vunpack.c.l.b16 %v185
    %v282 = vunpack.c.l.b16 %v186
    %v283 = vunpack.c.l.b16 %v187
    %v284 = vunpack.c.l.b16 %v188
    %v285 = vunpack.c.l.b16 %v189
    %v286 = vunpack.c.l.b16 %v190
    %v287 = vunpack.c.l.b16 %v191
    %v288 = vunpack.c.l.b16 %v192
    %v289 = vunpack.c.l.b16 %v193
    %v290 = vunpack.c.l.b16 %v194
    %v291 = vunpack.c.l.b16 %v195
    %v292 = vunpack.c.l.b16 %v196
    %v293 = vunpack.c.l.b16 %v197
    %v294 = vunpack.c.l.b16 %v198
    %v295 = vunpack.c.l.b16 %v199
    %v296 = vunpack.c.l.b16 %v200
    %v297 = vunpack.c.l.b16 %v201
    %v298 = vunpack.c.l.b16 %v202
    %v299 = vunpack.c.l.b16 %v203
    %v300 = vunpack.c.l.b16 %v204
    %v301 = vunpack.c.l.b16 %v205
    %v302 = vunpack.c.l.b16 %v206
    %v303 = vunpack.c.l.b16 %v207
    %v304 = vunpack.c.l.b16 %v208
    %v305 = vunpack.c.l.b16 %v209
    %v306 = vunpack.c.l.b16 %v210
    %v307 = vunpack.c.l.b16 %v211
    %v308 = vpack.c.b16 %v261, %v260
    %v309 = vpack.c.b16 %v263, %v262
    %v310 = vpack.c.b16 %v265, %v264
    %v311 = vpack.c.b16 %v267, %v266
    %v312 = vpack.c.b16 %v269, %v268
    %v313 = vpack.c.b16 %v271, %v270
    %v314 = vpack.c.b16 %v273, %v272
    %v315 = vpack.c.b16 %v275, %v274
    %v316 = vpack.c.b16 %v277, %v276
    %v317 = vpack.c.b16 %v279, %v278
    %v318 = vpack.c.b16 %v281, %v280
    %v319 = vpack.c.b16 %v283, %v282
    %v320 = vpack.c.b16 %v285, %v284
    %v321 = vpack.c.b16 %v287, %v286
    %v322 = vpack.c.b16 %v289, %v288
    %v323 = vpack.c.b16 %v291, %v290
    %v324 = vpack.c.b16 %v293, %v292
    %v325 = vpack.c.b16 %v295, %v294
    %v326 = vpack.c.b16 %v297, %v296
    %v327 = vpack.c.b16 %v299, %v298
    %v328 = vpack.c.b16 %v301, %v300
    %v329 = vpack.c.b16 %v303, %v302
    %v330 = vpack.c.b16 %v305, %v304
    %v331 = vpack.c.b16 %v307, %v306
    %356 = vmatprep.subr.bf16.mxu0 0
    %357 = vmatpush1.bf16.msra.mxu0 %v315
    %358 = vmatprep.subr.bf16.mxu0 0
    %359 = vmatpush1.bf16.msra.mxu0 %v314
    %360 = vmatprep.subr.bf16.mxu0 0
    %361 = vmatpush1.bf16.msra.mxu0 %v313
    %362 = vmatprep.subr.bf16.mxu0 0
    %363 = vmatpush1.bf16.msra.mxu0 %v312
    %364 = vmatprep.subr.bf16.mxu0 0
    %365 = vmatpush1.bf16.msra.mxu0 %v311
    %366 = vmatprep.subr.bf16.mxu0 0
    %367 = vmatpush1.bf16.msra.mxu0 %v310
    %368 = vmatprep.subr.bf16.mxu0 0
    %369 = vmatpush1.bf16.msra.mxu0 %v309
    %370 = vmatprep.subr.bf16.mxu0 0
    %371 = vmatpush1.bf16.msra.mxu0 %v308
    %372 = vmatprep.subr.bf16.mxu0 0
    %373 = vmatpush2.bf16.msra.mxu0 %v323
    %374 = vmatprep.subr.bf16.mxu0 0
    %375 = vmatpush2.bf16.msra.mxu0 %v322
    %376 = vmatprep.subr.bf16.mxu0 0
    %377 = vmatpush2.bf16.msra.mxu0 %v321
    %378 = vmatprep.subr.bf16.mxu0 0
    %379 = vmatpush2.bf16.msra.mxu0 %v320
    %380 = vmatprep.subr.bf16.mxu0 0
    %381 = vmatpush2.bf16.msra.mxu0 %v319
    %382 = vmatprep.subr.bf16.mxu0 0
    %383 = vmatpush2.bf16.msra.mxu0 %v318
    %384 = vmatprep.subr.bf16.mxu0 0
    %385 = vmatpush2.bf16.msra.mxu0 %v317
    %386 = vmatprep.subr.bf16.mxu0 0
    %387 = vmatpush2.bf16.msra.mxu0 %v316
    %388 = vmatprep.mubr.bf16.mxu0 %v71
    %389 = vmatmul.mubr.bf16.gmra.mxu0 %v160
    %v390 = vpop.f32.mrf.mxu0
    %v391 = vadd.f32 0.0, %v390
    %v392 = vpop.f32.mrf.mxu0
    %v393 = vpop.f32.mrf.mxu0
    %v394 = vadd.f32 0.0, %v393
    %v395 = vpop.f32.mrf.mxu0
    %396 = vmatprep.mubr.bf16.mxu0 %v72
    %397 = vmatmul.mubr.bf16.gmra.mxu0 %v161
    %v398 = vpop.f32.mrf.mxu0
    %v399 = vadd.f32 0.0, %v398
    %v400 = vpop.f32.mrf.mxu0
    %v401 = vpop.f32.mrf.mxu0
    %v402 = vadd.f32 0.0, %v401
    %v403 = vpop.f32.mrf.mxu0
    %404 = vdwg.mxu0
    %405 = vmatprep.subr.bf16.mxu0 0
    %406 = vmatpush1.bf16.msra.mxu0 %v331
    %407 = vmatprep.subr.bf16.mxu0 0
    %408 = vmatpush1.bf16.msra.mxu0 %v330
    %409 = vmatprep.subr.bf16.mxu0 0
    %410 = vmatpush1.bf16.msra.mxu0 %v329
    %411 = vmatprep.subr.bf16.mxu0 0
    %412 = vmatpush1.bf16.msra.mxu0 %v328
    %413 = vmatprep.subr.bf16.mxu0 0
    %414 = vmatpush1.bf16.msra.mxu0 %v327
    %415 = vmatprep.subr.bf16.mxu0 0
    %416 = vmatpush1.bf16.msra.mxu0 %v326
    %417 = vmatprep.subr.bf16.mxu0 0
    %418 = vmatpush1.bf16.msra.mxu0 %v325
    %419 = vmatprep.subr.bf16.mxu0 0
    %420 = vmatpush1.bf16.msra.mxu0 %v324
    %421 = vmatprep.subr.bf16.mxu0 0
    %422 = vmatpush2.bf16.msra.mxu0 0
    %423 = vmatprep.subr.bf16.mxu0 0
    %424 = vmatpush2.bf16.msra.mxu0 0
    %425 = vmatprep.subr.bf16.mxu0 0
    %426 = vmatpush2.bf16.msra.mxu0 0
    %427 = vmatprep.subr.bf16.mxu0 0
    %428 = vmatpush2.bf16.msra.mxu0 0
    %429 = vmatprep.subr.bf16.mxu0 0
    %430 = vmatpush2.bf16.msra.mxu0 0
    %431 = vmatprep.subr.bf16.mxu0 0
    %432 = vmatpush2.bf16.msra.mxu0 0
    %433 = vmatprep.subr.bf16.mxu0 0
    %434 = vmatpush2.bf16.msra.mxu0 0
    %435 = vmatprep.subr.bf16.mxu0 0
    %436 = vmatpush2.bf16.msra.mxu0 0
    %437 = vmatprep.mubr.bf16.mxu0 0
    %438 = vmatmul.mubr.bf16.gmra.mxu0 %v162
    %v439 = vpop.f32.mrf.mxu0
    %v440 = vadd.f32 %v391, %v439
    %v441 = vpop.f32.mrf.mxu0
    %v442 = vpop.f32.mrf.mxu0
    %v443 = vadd.f32 %v394, %v442
    %v444 = vpop.f32.mrf.mxu0
    %445 = vmatprep.mubr.bf16.mxu0 0
    %446 = vmatmul.mubr.bf16.gmra.mxu0 %v163
    %v447 = vpop.f32.mrf.mxu0
    %v448 = vadd.f32 %v399, %v447
    %v449 = vpop.f32.mrf.mxu0
    %v450 = vpop.f32.mrf.mxu0
    %v451 = vadd.f32 %v402, %v450
    %v452 = vpop.f32.mrf.mxu0
    %453 = vdwg.mxu0
    %v454 = vadd.f32 %v440, %v443
    %v455 = vadd.f32 %v454, %v448
    %v456 = vadd.f32 %v455, %v451
    %v457 = vrot.slane %v456, 4
    %v458 = vadd.f32 %v456, %v457
    %v459 = vrot.slane %v458, 2
    %v460 = vadd.f32 %v458, %v459
    %v461 = vrot.slane %v460, 1
    %v462 = vadd.f32 %v460, %v461
    %463 = vrot.lane.b32.xlu0 %v462, 8
    %v464 = vpop.permute.xlu0 %463
    %v465 = vadd.f32 %v462, %v464
    %466 = vrot.lane.b32.xlu0 %v465, 16
    %v467 = vpop.permute.xlu0 %466
    %v468 = vadd.f32 %v465, %v467
    %469 = vrot.lane.b32.xlu0 %v468, 32
    %v470 = vpop.permute.xlu0 %469
    %v471 = vadd.f32 %v468, %v470
    %472 = vrot.lane.b32.xlu0 %v471, 64
    %v473 = vpop.permute.xlu0 %472
    %v474 = vadd.f32 %v471, %v473
    %v475 = vmul.f32 %v440, %v440
    %v476 = vmul.f32 %v443, %v443
    %v477 = vmul.f32 %v448, %v448
    %v478 = vmul.f32 %v451, %v451
    %v479 = vadd.f32 %v475, %v476
    %v480 = vadd.f32 %v479, %v477
    %v481 = vadd.f32 %v480, %v478
    %v482 = vrot.slane %v481, 4
    %v483 = vadd.f32 %v481, %v482
    %v484 = vrot.slane %v483, 2
    %v485 = vadd.f32 %v483, %v484
    %v486 = vrot.slane %v485, 1
    %v487 = vadd.f32 %v485, %v486
    %488 = vrot.lane.b32.xlu0 %v487, 8
    %v489 = vpop.permute.xlu0 %488
    %v490 = vadd.f32 %v487, %v489
    %491 = vrot.lane.b32.xlu0 %v490, 16
    %v492 = vpop.permute.xlu0 %491
    %v493 = vadd.f32 %v490, %v492
    %494 = vrot.lane.b32.xlu0 %v493, 32
    %v495 = vpop.permute.xlu0 %494
    %v496 = vadd.f32 %v493, %v495
    %497 = vrot.lane.b32.xlu0 %v496, 64
    %v498 = vpop.permute.xlu0 %497
    %v499 = vadd.f32 %v496, %v498
    %v500 = vmul.f32 %v474, 0.001953125
    %v501 = vmul.f32 %v499, 0.001953125
    %v502 = vmul.f32 %v500, %v500
    %v503 = vsub.f32 %v501, %v502
    %v504 = vmax.f32 %v503, 0.0
    %v505 = vadd.f32 %v504, 1e-05
    %v506 = vrsqrt.pop %v505
    %v508 = vrot.slane %v57, 1
    %v510 = vmul.f32 %v506, %v508
    %v511 = vlaneseq
    %v512 = vshrl.u32 %v511, 7
    %v513 = vsub.s32 0, %v512
    %v514 = vrot.slane %v500, %v513
    %v515 = vsub.f32 %v440, %v514
    %v516 = vsub.f32 %v443, %v514
    %v517 = vsub.f32 %v448, %v514
    %v518 = vsub.f32 %v451, %v514
    %v519 = vlaneseq
    %v520 = vshrl.u32 %v519, 7
    %v521 = vsub.s32 0, %v520
    %v522 = vrot.slane %v510, %v521
    %v523 = vmul.f32 %v515, %v522
    %v524 = vmul.f32 %v516, %v522
    %v525 = vmul.f32 %v517, %v522
    %v526 = vmul.f32 %v518, %v522
    %v527 = vlaneseq
    %v528 = vshrl.u32 %v527, 7
    %v529 = vsub.s32 2, %v528
    %v530 = vrot.slane %v57, %v529
    %v531 = vadd.f32 %v523, %v530
    %v532 = vadd.f32 %v524, %v530
    %v533 = vadd.f32 %v525, %v530
    %v534 = vadd.f32 %v526, %v530
    %v535 = vadd.f32 %v59, %v531
    %v536 = vadd.f32 %v60, %v532
    %v537 = vadd.f32 %v61, %v533
    %v538 = vadd.f32 %v62, %v534
    %v539 = vlaneseq
    %v540 = vshrl.u32 %v539, 7
    %v541 = vsub.s32 3, %v540
    %v542 = vrot.slane %v57, %v541
    %v543 = vadd.f32 %v535, %v542
    %v544 = vadd.f32 %v536, %v542
    %v545 = vadd.f32 %v537, %v542
    %v546 = vadd.f32 %v538, %v542
    %vm547 = vcmp.ge.f32.partialorder %v543, 0.0
    %vm548 = vcmp.ge.f32.partialorder %v544, 0.0
    %vm549 = vcmp.ge.f32.partialorder %v545, 0.0
    %vm550 = vcmp.ge.f32.partialorder %v546, 0.0
    %v551 = vlaneseq
    %v552 = vshrl.u32 %v551, 7
    %v553 = vsub.s32 4, %v552
    %v554 = vrot.slane %v57, %v553
    %v555 = vmul.f32 %v554, %v543
    %v556 = vmul.f32 %v554, %v544
    %v557 = vmul.f32 %v554, %v545
    %v558 = vmul.f32 %v554, %v546
    %v559 = vsel %vm547, %v543, %v555
    %v560 = vsel %vm548, %v544, %v556
    %v561 = vsel %vm549, %v545, %v557
    %v562 = vsel %vm550, %v546, %v558
    %v563 = vlaneseq
    %v564 = vshrl.u32 %v563, 7
    %v565 = vsub.s32 5, %v564
    %v566 = vrot.slane %v57, %v565
    %v567 = vadd.f32 %v559, %v566
    %v568 = vadd.f32 %v560, %v566
    %v569 = vadd.f32 %v561, %v566
    %v570 = vadd.f32 %v562, %v566
    %v571 = vlaneseq
    %v572 = vshrl.u32 %v571, 7
    %v573 = vsub.s32 6, %v572
    %v574 = vrot.slane %v57, %v573
    %v575 = vadd.f32 %v567, %v574
    %v576 = vadd.f32 %v568, %v574
    %v577 = vadd.f32 %v569, %v574
    %v578 = vadd.f32 %v570, %v574
    %v579 = vpack.c.bf16 %v576, %v575
    %v580 = vpack.c.bf16 %v578, %v577
    %v581 = vld [vmem:[#allocation5 + $0xc0] sm:$0xf]
    %v582 = vld [vmem:[#allocation5 + $0xc4] sm:$0xf]
    %v583 = vld [vmem:[#allocation5 + $0xc8] sm:$0xf]
    %v584 = vld [vmem:[#allocation5 + $0xcc] sm:$0xf]
    %v585 = vld [vmem:[#allocation5 + $0xd0] sm:$0xf]
    %v586 = vld [vmem:[#allocation5 + $0xd4] sm:$0xf]
    %v587 = vld [vmem:[#allocation5 + $0xd8] sm:$0xf]
    %v588 = vld [vmem:[#allocation5 + $0xdc] sm:$0xf]
    %v589 = vld [vmem:[#allocation5 + $0xe0] sm:$0xf]
    %v590 = vld [vmem:[#allocation5 + $0xe4] sm:$0xf]
    %v591 = vld [vmem:[#allocation5 + $0xe8] sm:$0xf]
    %v592 = vld [vmem:[#allocation5 + $0xec] sm:$0xf]
    %v593 = vld [vmem:[#allocation5 + $0xf0] sm:$0xf]
    %v594 = vld [vmem:[#allocation5 + $0xf4] sm:$0xf]
    %v595 = vld [vmem:[#allocation5 + $0xf8] sm:$0xf]
    %v596 = vld [vmem:[#allocation5 + $0xfc] sm:$0xf]
    %v613 = vunpack.c.l.b16 %v581
    %v614 = vunpack.c.l.b16 %v582
    %v615 = vunpack.c.l.b16 %v583
    %v616 = vunpack.c.l.b16 %v584
    %v617 = vunpack.c.l.b16 %v585
    %v618 = vunpack.c.l.b16 %v586
    %v619 = vunpack.c.l.b16 %v587
    %v620 = vunpack.c.l.b16 %v588
    %v621 = vunpack.c.l.b16 %v589
    %v622 = vunpack.c.l.b16 %v590
    %v623 = vunpack.c.l.b16 %v591
    %v624 = vunpack.c.l.b16 %v592
    %v625 = vunpack.c.l.b16 %v593
    %v626 = vunpack.c.l.b16 %v594
    %v627 = vunpack.c.l.b16 %v595
    %v628 = vunpack.c.l.b16 %v596
    %v629 = vpack.c.b16 %v614, %v613
    %v630 = vpack.c.b16 %v616, %v615
    %v631 = vpack.c.b16 %v618, %v617
    %v632 = vpack.c.b16 %v620, %v619
    %v633 = vpack.c.b16 %v622, %v621
    %v634 = vpack.c.b16 %v624, %v623
    %v635 = vpack.c.b16 %v626, %v625
    %v636 = vpack.c.b16 %v628, %v627
    %645 = vmatprep.subr.bf16.mxu0 0
    %646 = vmatpush1.bf16.msra.mxu0 %v636
    %647 = vmatprep.subr.bf16.mxu0 0
    %648 = vmatpush1.bf16.msra.mxu0 %v635
    %649 = vmatprep.subr.bf16.mxu0 0
    %650 = vmatpush1.bf16.msra.mxu0 %v634
    %651 = vmatprep.subr.bf16.mxu0 0
    %652 = vmatpush1.bf16.msra.mxu0 %v633
    %653 = vmatprep.subr.bf16.mxu0 0
    %654 = vmatpush1.bf16.msra.mxu0 %v632
    %655 = vmatprep.subr.bf16.mxu0 0
    %656 = vmatpush1.bf16.msra.mxu0 %v631
    %657 = vmatprep.subr.bf16.mxu0 0
    %658 = vmatpush1.bf16.msra.mxu0 %v630
    %659 = vmatprep.subr.bf16.mxu0 0
    %660 = vmatpush1.bf16.msra.mxu0 %v629
    %661 = vmatprep.subr.bf16.mxu0 0
    %662 = vmatpush2.bf16.msra.mxu0 0
    %663 = vmatprep.subr.bf16.mxu0 0
    %664 = vmatpush2.bf16.msra.mxu0 0
    %665 = vmatprep.subr.bf16.mxu0 0
    %666 = vmatpush2.bf16.msra.mxu0 0
    %667 = vmatprep.subr.bf16.mxu0 0
    %668 = vmatpush2.bf16.msra.mxu0 0
    %669 = vmatprep.subr.bf16.mxu0 0
    %670 = vmatpush2.bf16.msra.mxu0 0
    %671 = vmatprep.subr.bf16.mxu0 0
    %672 = vmatpush2.bf16.msra.mxu0 0
    %673 = vmatprep.subr.bf16.mxu0 0
    %674 = vmatpush2.bf16.msra.mxu0 0
    %675 = vmatprep.subr.bf16.mxu0 0
    %676 = vmatpush2.bf16.msra.mxu0 0
    %677 = vmatprep.mubr.bf16.mxu0 0
    %678 = vmatmul.mubr.bf16.gmra.mxu0 %v579
    %v679 = vpop.f32.mrf.mxu0
    %v680 = vadd.f32 0.0, %v679
    %v681 = vpop.f32.mrf.mxu0
    %v682 = vpop.f32.mrf.mxu0
    %v683 = vadd.f32 0.0, %v682
    %v684 = vpop.f32.mrf.mxu0
    %685 = vmatprep.mubr.bf16.mxu0 0
    %686 = vmatmul.mubr.bf16.gmra.mxu0 %v580
    %v687 = vpop.f32.mrf.mxu0
    %v688 = vadd.f32 0.0, %v687
    %v689 = vpop.f32.mrf.mxu0
    %v690 = vpop.f32.mrf.mxu0
    %v691 = vadd.f32 0.0, %v690
    %v692 = vpop.f32.mrf.mxu0
    %693 = vdwg.mxu0
    %v694 = vadd.f32 %v680, %v683
    %v695 = vadd.f32 %v694, %v688
    %v696 = vadd.f32 %v695, %v691
    %v697 = vrot.slane %v696, 4
    %v698 = vadd.f32 %v696, %v697
    %v699 = vrot.slane %v698, 2
    %v700 = vadd.f32 %v698, %v699
    %v701 = vrot.slane %v700, 1
    %v702 = vadd.f32 %v700, %v701
    %703 = vrot.lane.b32.xlu0 %v702, 8
    %v704 = vpop.permute.xlu0 %703
    %v705 = vadd.f32 %v702, %v704
    %706 = vrot.lane.b32.xlu0 %v705, 16
    %v707 = vpop.permute.xlu0 %706
    %v708 = vadd.f32 %v705, %v707
    %709 = vrot.lane.b32.xlu0 %v708, 32
    %v710 = vpop.permute.xlu0 %709
    %v711 = vadd.f32 %v708, %v710
    %712 = vrot.lane.b32.xlu0 %v711, 64
    %v713 = vpop.permute.xlu0 %712
    %v714 = vadd.f32 %v711, %v713
    %v715 = vmul.f32 %v680, %v680
    %v716 = vmul.f32 %v683, %v683
    %v717 = vmul.f32 %v688, %v688
    %v718 = vmul.f32 %v691, %v691
    %v719 = vadd.f32 %v715, %v716
    %v720 = vadd.f32 %v719, %v717
    %v721 = vadd.f32 %v720, %v718
    %v722 = vrot.slane %v721, 4
    %v723 = vadd.f32 %v721, %v722
    %v724 = vrot.slane %v723, 2
    %v725 = vadd.f32 %v723, %v724
    %v726 = vrot.slane %v725, 1
    %v727 = vadd.f32 %v725, %v726
    %728 = vrot.lane.b32.xlu0 %v727, 8
    %v729 = vpop.permute.xlu0 %728
    %v730 = vadd.f32 %v727, %v729
    %731 = vrot.lane.b32.xlu0 %v730, 16
    %v732 = vpop.permute.xlu0 %731
    %v733 = vadd.f32 %v730, %v732
    %734 = vrot.lane.b32.xlu0 %v733, 32
    %v735 = vpop.permute.xlu0 %734
    %v736 = vadd.f32 %v733, %v735
    %737 = vrot.lane.b32.xlu0 %v736, 64
    %v738 = vpop.permute.xlu0 %737
    %v739 = vadd.f32 %v736, %v738
    %v740 = vmul.f32 %v714, 0.001953125
    %v741 = vmul.f32 %v739, 0.001953125
    %v742 = vmul.f32 %v740, %v740
    %v743 = vsub.f32 %v741, %v742
    %v744 = vmax.f32 %v743, 0.0
    %v745 = vadd.f32 %v744, 1e-05
    %v746 = vrsqrt.pop %v745
    %v747 = vrot.slane %v57, 7
    %v749 = vmul.f32 %v746, %v747
    %v750 = vlaneseq
    %v751 = vshrl.u32 %v750, 7
    %v752 = vsub.s32 0, %v751
    %v753 = vrot.slane %v740, %v752
    %v754 = vsub.f32 %v680, %v753
    %v755 = vsub.f32 %v683, %v753
    %v756 = vsub.f32 %v688, %v753
    %v757 = vsub.f32 %v691, %v753
    %v758 = vlaneseq
    %v759 = vshrl.u32 %v758, 7
    %v760 = vsub.s32 0, %v759
    %v761 = vrot.slane %v749, %v760
    %v762 = vmul.f32 %v754, %v761
    %v763 = vmul.f32 %v755, %v761
    %v764 = vmul.f32 %v756, %v761
    %v765 = vmul.f32 %v757, %v761
    %v766 = vlaneseq
    %v767 = vshrl.u32 %v766, 7
    %v768 = vsub.s32 0, %v767
    %v769 = vrot.slane %v58, %v768
    %v770 = vadd.f32 %v762, %v769
    %v771 = vadd.f32 %v763, %v769
    %v772 = vadd.f32 %v764, %v769
    %v773 = vadd.f32 %v765, %v769
    %v774 = vadd.f32 %v567, %v770
    %v775 = vadd.f32 %v568, %v771
    %v776 = vadd.f32 %v569, %v772
    %v777 = vadd.f32 %v570, %v773
    %v778 = vlaneseq
    %v779 = vshrl.u32 %v778, 7
    %v780 = vsub.s32 1, %v779
    %v781 = vrot.slane %v58, %v780
    %v782 = vadd.f32 %v774, %v781
    %v783 = vadd.f32 %v775, %v781
    %v784 = vadd.f32 %v776, %v781
    %v785 = vadd.f32 %v777, %v781
    %vm786 = vcmp.ge.f32.partialorder %v782, 0.0
    %vm787 = vcmp.ge.f32.partialorder %v783, 0.0
    %vm788 = vcmp.ge.f32.partialorder %v784, 0.0
    %vm789 = vcmp.ge.f32.partialorder %v785, 0.0
    %v790 = vmul.f32 %v554, %v782
    %v791 = vmul.f32 %v554, %v783
    %v792 = vmul.f32 %v554, %v784
    %v793 = vmul.f32 %v554, %v785
    %v794 = vsel %vm786, %v782, %v790
    %v795 = vsel %vm787, %v783, %v791
    %v796 = vsel %vm788, %v784, %v792
    %v797 = vsel %vm789, %v785, %v793
    %v798 = vlaneseq
    %v799 = vshrl.u32 %v798, 7
    %v800 = vsub.s32 2, %v799
    %v801 = vrot.slane %v58, %v800
    %v802 = vadd.f32 %v794, %v801
    %v803 = vadd.f32 %v795, %v801
    %v804 = vadd.f32 %v796, %v801
    %v805 = vadd.f32 %v797, %v801
    %806 = vst [vmem:[#allocation8] sm:$0xff] %v802
    %807 = vst [vmem:[#allocation8 + $0x8] sm:$0xff] %v803
    %808 = vst [vmem:[#allocation8 + $0x10] sm:$0xff] %v804
    %809 = vst [vmem:[#allocation8 + $0x18] sm:$0xff] %v805
    // Predicated region
    $region26: #{tpu_custom_call.1} parent=1 // pred_check
      _
    $region27: #{tpu_custom_call.1} parent=1 // pred_check_branch
      %811 = sbr.rel (0) target = $region29
    $region28: #{tpu_custom_call.1} parent=1 // pred_region
      %s813 = ssub.s32 512, 512
      %814 = vsyncadd [#allocation4], %s813
      %s815 = sshll.u32 [#allocation8], 4
      %s816 = int_to_ptr.vmem [resolvable:$true] %s815
      %821 = dma.vmem_to_hbm [thread:$0]  %s816, 512, %s3, [#allocation4], 128, 128, 8
    $region29: #{tpu_custom_call.1} parent=1 // pred_fallthru
      _
    // Predicated region
    $region30: #{tpu_custom_call.1} parent=1 // pred_check
      _
    $region31: #{tpu_custom_call.1} parent=1 // pred_check_branch
      %823 = sbr.rel (0) target = $region33
    $region32: #{tpu_custom_call.1} parent=1 // pred_region
      %824 = dma.done [#allocation4], 512
    $region33: #{tpu_custom_call.1} parent=1 // pred_fallthru
      _
    %825 = vsyncpa [#allocation3], 1
    %826 = vsyncpa [#allocation6], 1
    %827 = vsyncpa [#allocation4], 1

</llo_original>
